<compile_context>
chip_gen: v6e
topology: v6e:2x2x1
jax: 0.10.0
libtpu: 0.0.40
codegen_flags: <defaults>
</compile_context>

<pallas_src>
import functools

import jax
import jax.numpy as jnp
from jax.experimental import pallas as pl
from jax.experimental.pallas import tpu as pltpu


_COL_CANDIDATES = (1024, 512, 256, 128)   # lane-dense widths (multiples of 128)
_TARGET_BLOCK_ELEMS = 512 * 1024          # ~2 MiB per f32 input block (1 MiB bf16)


def _charbonnier_partial_kernel(x_ref, t_ref, o_ref, *, eps, row_tile, strip,
                                steps_per_chunk, full_rows, rem_cols, need_mask):
    """Accumulates per-lane partial sums of sqrt((t-x)^2 + eps) for one chunk.

    x_ref, t_ref : (row_tile, cols) tiles of the flattened inputs (native dtype)
    o_ref        : (strip, cols) f32 accumulator block, resident across the
                   trailing ("arbitrary") reduction axis.
    """
    p = pl.program_id(0)          # parallel chunk id (megacore axis)
    r = pl.program_id(1)          # reduction step within the chunk

    @pl.when(r == 0)
    def _():
        o_ref[...] = jnp.zeros_like(o_ref)

    cols = x_ref.shape[1]
    num_strips = row_tile // strip
    row0 = (p * steps_per_chunk + r) * row_tile   # intended global first row

    def body(g, carry):
        s0 = pl.multiple_of(g * strip, strip)
        x = x_ref[pl.ds(s0, strip), :].astype(jnp.float32)
        t = t_ref[pl.ds(s0, strip), :].astype(jnp.float32)
        d = t - x
        v = jnp.sqrt(d * d + eps)
        if need_mask:
            row_idx = row0 + g * strip + jax.lax.broadcasted_iota(
                jnp.int32, (strip, cols), 0)
            if rem_cols:
                col_idx = jax.lax.broadcasted_iota(jnp.int32, (strip, cols), 1)
                valid = (row_idx < full_rows) | (
                    (row_idx == full_rows) & (col_idx < rem_cols))
            else:
                valid = row_idx < full_rows
            v = jnp.where(valid, v, 0.0)
        o_ref[...] += v
        return carry

    jax.lax.fori_loop(0, num_strips, body, 0)


def charbonnier_loss(inputs, target, eps=1e-6):
    """Pallas TPU implementation of CharbonnierLoss.forward."""
    assert inputs.shape == target.shape, (inputs.shape, target.shape)
    n = int(inputs.size)
    x = inputs.reshape(-1)          # native dtype: no wrapper-side upcast
    t = target.reshape(-1)

    # Lane-dense 2-D view. Prefer a multiple-of-128 column count dividing n
    # exactly so the reshape is metadata-only (no HBM pad/copy).
    cols = next((c for c in _COL_CANDIDATES if n % c == 0), None)
    if cols is None:
        # TODO(synk): sizes not divisible by 128 still take a whole-array pad
        # copy; could be avoided with a manual-DMA (pl.ANY) 1-D variant.
        cols = 128
        n_pad = pl.cdiv(n, cols) * cols
        x = jnp.pad(x, (0, n_pad - n))
        t = jnp.pad(t, (0, n_pad - n))
        rows = n_pad // cols
    else:
        rows = n // cols
    x2 = x.reshape(rows, cols)
    t2 = t.reshape(rows, cols)

    # Row tiling: ~2 MiB (f32) per input block so 2 inputs x 2 pipeline
    # buffers stays well inside every generation's scoped-VMEM default.
    row_tile_target = _TARGET_BLOCK_ELEMS // cols       # multiple of 8
    if rows <= row_tile_target:
        row_tile = rows
        num_row_blocks = 1
    else:
        row_tile = row_tile_target
        num_row_blocks = pl.cdiv(rows, row_tile)

    # Leading "parallel" axis: two chunks so v7x's two TensorCores each take
    # half the rows; neutral on single-core v5e/v6e.
    num_chunks = min(2, num_row_blocks)
    steps_per_chunk = pl.cdiv(num_row_blocks, num_chunks)

    strip = 8 if (row_tile >= 8 and row_tile % 8 == 0) else row_tile
    acc_rows = strip

    full_rows = n // cols
    rem_cols = n % cols
    need_mask = (rem_cols != 0) or (num_chunks * steps_per_chunk * row_tile != rows)

    last_block = num_row_blocks - 1

    def in_map(p, r):
        # Clamp fully-out-of-range steps (odd block counts) onto the last real
        # block; their contribution is masked to zero inside the kernel.
        return (jnp.minimum(p * steps_per_chunk + r, last_block), 0)

    def out_map(p, r):
        return (p, 0)

    kernel = functools.partial(
        _charbonnier_partial_kernel,
        eps=float(eps), row_tile=row_tile, strip=strip,
        steps_per_chunk=steps_per_chunk, full_rows=full_rows,
        rem_cols=rem_cols, need_mask=need_mask)

    partials = pl.pallas_call(
        kernel,
        out_shape=jax.ShapeDtypeStruct((num_chunks * acc_rows, cols), jnp.float32),
        grid=(num_chunks, steps_per_chunk),
        in_specs=[
            pl.BlockSpec((row_tile, cols), in_map),
            pl.BlockSpec((row_tile, cols), in_map),
        ],
        out_specs=pl.BlockSpec((acc_rows, cols), out_map),
        compiler_params=pltpu.CompilerParams(
            dimension_semantics=("parallel", "arbitrary")),
    )(x2, t2)

    # Tiny final reduction of per-chunk, per-lane partials.
    return jnp.sum(partials) / jnp.float32(n)


def _reference(inputs, target, eps):
    """Plain-JAX reference mirroring the PyTorch forward."""
    return jnp.mean(jnp.sqrt((target - inputs) ** 2 + eps))


if __name__ == "__main__":
    key = jax.random.PRNGKey(0)
    k1, k2 = jax.random.split(key)
    shape = (2, 4, 16, 16)
    inputs = jax.random.normal(k1, shape, jnp.float32)
    target = jax.random.normal(k2, shape, jnp.float32)
    eps = 1e-6

    loss = jax.block_until_ready(charbonnier_loss(inputs, target, eps))
    ref = jax.block_until_ready(_reference(inputs, target, eps))

    assert loss.shape == (), loss.shape
    assert jnp.allclose(loss, ref, atol=1e-6, rtol=1e-5), (float(loss), float(ref))
    print("KERNEL_OK")
</pallas_src>

<mosaic_0001>
module attributes {stable_mosaic.version = 11 : i64} {
  func.func @_charbonnier_partial_kernel(%arg0: i32, %arg1: i32, %arg2: memref<2x1024xf32, #tpu.memory_space<vmem>>, %arg3: memref<2x1024xf32, #tpu.memory_space<vmem>>, %arg4: memref<2x1024xf32, #tpu.memory_space<vmem>>) attributes {dimension_semantics = [#tpu.dimension_semantics<parallel>, #tpu.dimension_semantics<arbitrary>], iteration_bounds = array<i64: 1, 1>, scalar_prefetch = 0 : i64, scratch_operands = 0 : i64, tpu.core_type = #tpu.core_type<tc>, window_params = [{transform_indices = @transform_0, window_bounds = array<i64: 2, 1024>}, {transform_indices = @transform_1, window_bounds = array<i64: 2, 1024>}, {transform_indices = @transform_2, window_bounds = array<i64: 2, 1024>}]} {
    %c0_i32 = arith.constant 0 : i32
    %0 = arith.cmpi eq, %arg1, %c0_i32 : i32
    %1 = arith.extui %0 : i1 to i32
    %c0_i32_0 = arith.constant 0 : i32
    %2 = arith.cmpi ne, %1, %c0_i32_0 : i32
    scf.if %2 {
      %cst_7 = arith.constant 0.000000e+00 : f32
      %17 = vector.broadcast %cst_7 : f32 to vector<2x1024xf32>
      %c0_8 = arith.constant 0 : index
      %c0_9 = arith.constant 0 : index
      %18 = vector.load %arg4[%c0_8, %c0_9] : memref<2x1024xf32, #tpu.memory_space<vmem>>, vector<2x1024xf32>
      tpu.vector_store %arg4[%c0_8, %c0_9], %17 {strides = array<i32>} : memref<2x1024xf32, #tpu.memory_space<vmem>>, vector<2x1024xf32>,
    } else {
    }
    %c0_i32_1 = arith.constant 0 : i32
    %c2_i32 = arith.constant 2 : i32
    %3 = arith.muli %c0_i32_1, %c2_i32 : i32
    %4 = tpu.assume_multiple %3, 2 : i32
    %5 = arith.index_cast %4 : i32 to index
    %c0 = arith.constant 0 : index
    %6 = vector.load %arg2[%5, %c0] : memref<2x1024xf32, #tpu.memory_space<vmem>>, vector<2x1024xf32>
    %7 = arith.index_cast %4 : i32 to index
    %c0_2 = arith.constant 0 : index
    %8 = vector.load %arg3[%7, %c0_2] : memref<2x1024xf32, #tpu.memory_space<vmem>>, vector<2x1024xf32>
    %9 = arith.subf %8, %6 : vector<2x1024xf32>
    %10 = arith.mulf %9, %9 : vector<2x1024xf32>
    %cst = arith.constant 9.99999997E-7 : f32
    %11 = vector.broadcast %cst : f32 to vector<2x1024xf32>
    %12 = arith.addf %10, %11 : vector<2x1024xf32>
    %13 = math.sqrt %12 : vector<2x1024xf32>
    %c0_3 = arith.constant 0 : index
    %c0_4 = arith.constant 0 : index
    %14 = vector.load %arg4[%c0_3, %c0_4] : memref<2x1024xf32, #tpu.memory_space<vmem>>, vector<2x1024xf32>
    %15 = arith.addf %14, %13 : vector<2x1024xf32>
    %c0_5 = arith.constant 0 : index
    %c0_6 = arith.constant 0 : index
    %16 = vector.load %arg4[%c0_5, %c0_6] : memref<2x1024xf32, #tpu.memory_space<vmem>>, vector<2x1024xf32>
    tpu.vector_store %arg4[%c0_5, %c0_6], %15 {strides = array<i32>} : memref<2x1024xf32, #tpu.memory_space<vmem>>, vector<2x1024xf32>,
    %c1_i32 = arith.constant 1 : i32
    return
  }
  func.func @transform_0(%arg0: i32, %arg1: i32) -> (i32, i32) {
    %c1_i32 = arith.constant 1 : i32
    %0 = arith.muli %arg0, %c1_i32 : i32
    %1 = arith.addi %0, %arg1 : i32
    %c0_i32 = arith.constant 0 : i32
    %2 = arith.minsi %1, %c0_i32 : i32
    %c0_i32_0 = arith.constant 0 : i32
    %c0_i32_1 = arith.constant 0 : i32
    return %2, %c0_i32_0 : i32, i32
  }
  func.func @transform_1(%arg0: i32, %arg1: i32) -> (i32, i32) {
    %c1_i32 = arith.constant 1 : i32
    %0 = arith.muli %arg0, %c1_i32 : i32
    %1 = arith.addi %0, %arg1 : i32
    %c0_i32 = arith.constant 0 : i32
    %2 = arith.minsi %1, %c0_i32 : i32
    %c0_i32_0 = arith.constant 0 : i32
    %c0_i32_1 = arith.constant 0 : i32
    return %2, %c0_i32_0 : i32, i32
  }
  func.func @transform_2(%arg0: i32, %arg1: i32) -> (i32, i32) {
    %c0_i32 = arith.constant 0 : i32
    %c0_i32_0 = arith.constant 0 : i32
    return %arg0, %c0_i32 : i32, i32
  }
}

</mosaic_0001>

<llo_original>
// kernel: tpu_custom_call.1
$region0: #{tpu_custom_call.1}
  #allocation0 [shape = 'u32[]', space=smem, size = 0x4, offset = 0x4, fixed_abs, tag = 'smem constant byte address 0x4 - core index']
  #allocation1 [shape = 'u32[144,128]{1,0:T(1,128)}', space=vmem, size = 0x12000, scoped, tag = 'internal scratch']
  %s0 = inlined_call_operand.hbm [shape: f32[2,1024], index: 0, kind: input, shape index: {}]
  %s1 = inlined_call_operand.hbm [shape: f32[2,1024], index: 1, kind: input, shape index: {}]
  %s2 = inlined_call_operand.hbm [shape: f32[2,1024], index: 2, kind: output, shape index: {}]
  %s3 = sld [smem:[#allocation0]]
  $region30: #{tpu_custom_call.1} parent=0
    _
  %s5 = ssub.s32 1, %s3
  %s6 = scalar_select 0, %s5, %s3
  $region1: #{tpu_custom_call.1} parent=0
    #allocation2 [shape = 'u8[8192]{0}', space=vmem, size = 0x2000, scoped, tag = 'input window, operand 0, single buffered']
    #allocation3 [shape = 's32[1]{0}', space=sflag, size = 0x4, scoped, tag = 'scoped memory for tpu_custom_call.1']
    #allocation4 [shape = 's32[1]{0}', space=sflag, size = 0x4, scoped, tag = 'scoped memory for tpu_custom_call.1']
    #allocation5 [shape = 'u8[8192]{0}', space=vmem, size = 0x2000, scoped, tag = 'input window, operand 1, single buffered']
    #allocation6 [shape = 's32[1]{0}', space=sflag, size = 0x4, scoped, tag = 'scoped memory for tpu_custom_call.1']
    #allocation7 [shape = 'u8[8192]{0}', space=vmem, size = 0x2000, scoped, tag = 'output window, operand 0, single buffered']
    %7 = vsyncpa [#allocation3], 0
    %8 = vsyncpa [#allocation6], 0
    %9 = vsyncpa [#allocation4], 0
    // Predicated region
    $region2: #{tpu_custom_call.1} parent=1 // pred_check
      _
    $region3: #{tpu_custom_call.1} parent=1 // pred_check_branch
      %11 = sbr.rel (0) target = $region5
    $region4: #{tpu_custom_call.1} parent=1 // pred_region
      %s12 = sadd.s32 0, 0
      %p13 = scmp.lt.s32.totalorder %s12, 0
      %s14 = scalar_select %p13, %s12, 0
      %s16 = ssub.s32 256, 256
      %17 = vsyncadd [#allocation3], %s16
      %s18 = smul.addr %s14, 8
      %s19 = smul.addr %s18, 32
      %s20 = scalar_lea.hbm %s0, %s19
      %s22 = sshll.u32 [#allocation2], 4
      %s23 = int_to_ptr.vmem [resolvable:$true] %s22
      %25 = dma.hbm_to_vmem [thread:$0]  %s20, 256, %s23, [#allocation3]
    $region5: #{tpu_custom_call.1} parent=1 // pred_fallthru
      _
    // Predicated region
    $region6: #{tpu_custom_call.1} parent=1 // pred_check
      _
    $region7: #{tpu_custom_call.1} parent=1 // pred_check_branch
      %27 = sbr.rel (0) target = $region9
    $region8: #{tpu_custom_call.1} parent=1 // pred_region
      %s28 = sadd.s32 0, 0
      %p29 = scmp.lt.s32.totalorder %s28, 0
      %s30 = scalar_select %p29, %s28, 0
      %s32 = ssub.s32 256, 256
      %33 = vsyncadd [#allocation6], %s32
      %s34 = smul.addr %s30, 8
      %s35 = smul.addr %s34, 32
      %s36 = scalar_lea.hbm %s1, %s35
      %s38 = sshll.u32 [#allocation5], 4
      %s39 = int_to_ptr.vmem [resolvable:$true] %s38
      %41 = dma.hbm_to_vmem [thread:$0]  %s36, 256, %s39, [#allocation6]
    $region9: #{tpu_custom_call.1} parent=1 // pred_fallthru
      _
    // Predicated region
    $region10: #{tpu_custom_call.1} parent=1 // pred_check
      _
    $region11: #{tpu_custom_call.1} parent=1 // pred_check_branch
      %43 = sbr.rel (0) target = $region13
    $region12: #{tpu_custom_call.1} parent=1 // pred_region
      %44 = dma.done [#allocation3], 256
    $region13: #{tpu_custom_call.1} parent=1 // pred_fallthru
      _
    // Predicated region
    $region14: #{tpu_custom_call.1} parent=1 // pred_check
      _
    $region15: #{tpu_custom_call.1} parent=1 // pred_check_branch
      %46 = sbr.rel (0) target = $region17
    $region16: #{tpu_custom_call.1} parent=1 // pred_region
      %47 = dma.done [#allocation6], 256
    $region17: #{tpu_custom_call.1} parent=1 // pred_fallthru
      _
    %s48 = sadd.s32 0, 0
    %p49 = scmp.lt.s32.totalorder %s48, 0
    %s50 = scalar_select %p49, %s48, 0
    %s51 = sadd.s32 0, 0
    %p52 = scmp.lt.s32.totalorder %s51, 0
    %s53 = scalar_select %p52, %s51, 0
    %p54 = scmp.eq.s32.totalorder 0, 0
    // Predicated region
    $region18: #{tpu_custom_call.1} parent=1 // pred_check
      %p55 = pneg %p54
    $region19: #{tpu_custom_call.1} parent=1 // pred_check_branch
      %57 = sbr.rel (%p55) target = $region21
    $region20: #{tpu_custom_call.1} parent=1 // pred_region
      %58 = vst [vmem:[#allocation7] sm:$0xff] 0.0
      %59 = vst [vmem:[#allocation7 + $0x8] sm:$0xff] 0.0
    $region21: #{tpu_custom_call.1} parent=1 // pred_fallthru
      _
    %s60 = smul.u32 0, 8
    %s61 = smul.addr %s60, 2
    %s62 = scalar_lea.vmem [#allocation2], %s61
    %v63 = vld [vmem:[%s62] sm:$0xff]
    %v64 = vld [vmem:[%s62 + $0x8] sm:$0xff]
    %s65 = smul.addr %s60, 2
    %s66 = scalar_lea.vmem [#allocation5], %s65
    %v67 = vld [vmem:[%s66] sm:$0xff]
    %v68 = vld [vmem:[%s66 + $0x8] sm:$0xff]
    %v69 = vsub.f32 %v67, %v63
    %v70 = vsub.f32 %v68, %v64
    %v71 = vmul.f32 %v69, %v69
    %v72 = vmul.f32 %v70, %v70
    %v73 = vadd.f32 %v71, 1e-06
    %v74 = vadd.f32 %v72, 1e-06
    %v75 = vrsqrt.pop %v73
    %v76 = vmul.f32 %v73, %v75
    %vm77 = vcmp.eq.f32.partialorder %v73, inf
    %v78 = vsel %vm77, %v73, %v76
    %vm79 = vcmp.eq.f32.partialorder %v73, 0.0
    %v80 = vand.u32 %v73, 2147483648
    %v81 = vsel %vm79, %v80, %v78
    %v82 = vrsqrt.pop %v74
    %v83 = vmul.f32 %v74, %v82
    %vm84 = vcmp.eq.f32.partialorder %v74, inf
    %v85 = vsel %vm84, %v74, %v83
    %vm86 = vcmp.eq.f32.partialorder %v74, 0.0
    %v87 = vand.u32 %v74, 2147483648
    %v88 = vsel %vm86, %v87, %v85
    %v89 = vld [vmem:[#allocation7] sm:$0xff]
    %v90 = vld [vmem:[#allocation7 + $0x8] sm:$0xff]
    %v91 = vadd.f32 %v89, %v81
    %v92 = vadd.f32 %v90, %v88
    %93 = vst [vmem:[#allocation7] sm:$0xff] %v91
    %94 = vst [vmem:[#allocation7 + $0x8] sm:$0xff] %v92
    // Predicated region
    $region22: #{tpu_custom_call.1} parent=1 // pred_check
      _
    $region23: #{tpu_custom_call.1} parent=1 // pred_check_branch
      %96 = sbr.rel (0) target = $region25
    $region24: #{tpu_custom_call.1} parent=1 // pred_region
      %s98 = ssub.s32 256, 256
      %99 = vsyncadd [#allocation4], %s98
      %s101 = sshll.u32 [#allocation7], 4
      %s102 = int_to_ptr.vmem [resolvable:$true] %s101
      %104 = dma.vmem_to_hbm [thread:$0]  %s102, 256, %s2, [#allocation4]
    $region25: #{tpu_custom_call.1} parent=1 // pred_fallthru
      _
    // Predicated region
    $region26: #{tpu_custom_call.1} parent=1 // pred_check
      _
    $region27: #{tpu_custom_call.1} parent=1 // pred_check_branch
      %106 = sbr.rel (0) target = $region29
    $region28: #{tpu_custom_call.1} parent=1 // pred_region
      %107 = dma.done [#allocation4], 256
    $region29: #{tpu_custom_call.1} parent=1 // pred_fallthru
      _
    %108 = vsyncpa [#allocation3], 1
    %109 = vsyncpa [#allocation6], 1
    %110 = vsyncpa [#allocation4], 1

</llo_original>
